<compile_context>
chip_gen: v6e
topology: v6e:2x2x1
jax: 0.10.0
libtpu: 0.0.40
codegen_flags: <defaults>
</compile_context>

<pallas_src>
import functools

import jax
import jax.numpy as jnp
from jax.experimental import pallas as pl
from jax.experimental.pallas import tpu as pltpu


def _round_up(n, m):
    return ((n + m - 1) // m) * m


def cbm_kernel(xT_ref, wsc_ref, wslab_ref, bslab_ref,
               cT_ref, outT_ref, l1_ref, div_ref, *,
               concept_size, hidden, output_size, seg, compute_dtype):
    C, H, O = concept_size, hidden, output_size

    wsc = wsc_ref[...]                               # (C, dim_pad) f32 (regularizers)
    xT = xT_ref[...]                                 # (dim_pad, TB) compute dtype

    # --- static, 8-row-aligned views into the packed weight slab.  Weights are
    #     stored in torch (out, in) orientation, which is exactly what the
    #     transposed (batch-in-lanes) formulation y_T = W @ h_T needs. ---
    w1 = wslab_ref[0:H, 0:C]                         # (H, C)
    w2 = wslab_ref[seg:seg + H, 0:H]                 # (H, H)
    w3 = wslab_ref[2 * seg:2 * seg + O, 0:H]         # (O, H)

    # biases stored as columns (f32) -> broadcast over lanes without transpose
    bsc = bslab_ref[0:C, 0:1]                        # (C, 1)
    b1 = bslab_ref[0:H, 1:2]                         # (H, 1)
    b2 = bslab_ref[0:H, 2:3]                         # (H, 1)
    b3 = bslab_ref[0:O, 3:4]                         # (O, 1)

    # ---- concept layer (transposed): c_T = Wsc @ x_T + bsc ----
    cT = jnp.dot(wsc.astype(compute_dtype), xT,
                 preferred_element_type=jnp.float32) + bsc
    cT_ref[...] = cT.astype(cT_ref.dtype)

    # ---- co MLP: Linear -> ReLU -> Linear -> ReLU -> Linear (f32 accumulate) ----
    h1 = jnp.maximum(jnp.dot(w1, cT.astype(compute_dtype),
                             preferred_element_type=jnp.float32) + b1, 0.0)
    h2 = jnp.maximum(jnp.dot(w2, h1.astype(compute_dtype),
                             preferred_element_type=jnp.float32) + b2, 0.0)
    outT = jnp.dot(w3, h2.astype(compute_dtype),
                   preferred_element_type=jnp.float32) + b3
    outT_ref[...] = outT.astype(outT_ref.dtype)

    # ---- Wsc regularizers: batch-independent -> compute only on grid step 0.
    #      Each grid step owns its own (1, TB) output block (no revisiting), so
    #      this is safe under megacore parallel semantics. ----
    @pl.when(pl.program_id(0) == 0)
    def _():
        l1 = jnp.sum(jnp.abs(wsc))
        sq = jnp.sum(wsc * wsc, axis=1, keepdims=True)
        inv_norm = jax.lax.rsqrt(jnp.maximum(sq, 1e-24))   # == 1/max(||row||, 1e-12)
        wn = wsc * inv_norm
        cos = jax.lax.dot_general(wn, wn, (((1,), (1,)), ((), ())),
                                  preferred_element_type=jnp.float32)
        ri = jax.lax.broadcasted_iota(jnp.int32, (C, C), 0)
        ci = jax.lax.broadcasted_iota(jnp.int32, (C, C), 1)
        d = cos - jnp.where(ri == ci, 1.0, 0.0)
        ones = jnp.ones(l1_ref.shape, jnp.float32)
        l1_ref[...] = ones * l1
        div_ref[...] = ones * jnp.sum(d * d)

    @pl.when(pl.program_id(0) != 0)
    def _():
        l1_ref[...] = jnp.zeros(l1_ref.shape, jnp.float32)
        div_ref[...] = jnp.zeros(div_ref.shape, jnp.float32)


def pack_weights(w1, w2, w3, *, seg, dtype):
    """Stack [W1; W2; W3] row-wise; every segment starts on an 8-row boundary and
    columns are zero-padded to 128 lanes (lane-dense, unmasked loads)."""
    width = 128

    def seg_pad(a, rows):
        return jnp.pad(a, ((0, rows - a.shape[0]), (0, width - a.shape[1])))

    r3 = _round_up(w3.shape[0], 8)
    return jnp.concatenate(
        [seg_pad(w1, seg), seg_pad(w2, seg), seg_pad(w3, r3)], axis=0
    ).astype(dtype)


def pack_biases(bsc, b1, b2, b3, *, seg):
    """Biases as columns (column j = bias of layer j), f32, 8-row-aligned."""
    b = jnp.zeros((seg, 8), jnp.float32)
    b = b.at[: bsc.size, 0].set(bsc.reshape(-1))
    b = b.at[: b1.size, 1].set(b1.reshape(-1))
    b = b.at[: b2.size, 2].set(b2.reshape(-1))
    b = b.at[: b3.size, 3].set(b3.reshape(-1))
    return b


def cbm_forward(x, params, *, batch_block=512, compute_dtype=jnp.bfloat16):
    """Full CBM forward pass. Returns (c, output, l1_loss, diversity_loss)."""
    wsc, bsc, w1, b1, w2, b2, w3, b3 = params
    B, dim = x.shape
    C, H, O = wsc.shape[0], w1.shape[0], w3.shape[0]
    seg = _round_up(H, 8)

    # lane-dense batch tile (multiple of 128); sweepable via batch_block
    tb = max(128, min(_round_up(batch_block, 128), _round_up(B, 128)))
    g = pl.cdiv(B, tb)
    b_pad = g * tb
    dp = _round_up(dim, 16)                          # clean sublane tiles for bf16/f32

    # transposed (batch-in-lanes) operands; zero padding is exact for the math
    xT = jnp.pad(x, ((0, b_pad - B), (0, dp - dim))).T.astype(compute_dtype)
    wsc_p = jnp.pad(wsc.astype(jnp.float32), ((0, 0), (0, dp - dim)))
    w_slab = pack_weights(w1, w2, w3, seg=seg, dtype=compute_dtype)
    b_slab = pack_biases(bsc, b1, b2, b3, seg=seg)

    kernel = functools.partial(
        cbm_kernel, concept_size=C, hidden=H, output_size=O, seg=seg,
        compute_dtype=compute_dtype)

    itemsize = jnp.dtype(compute_dtype).itemsize
    flops = 2 * b_pad * (dp * C + C * H + H * H + H * O) + 4 * C * dp + 2 * C * C * dp
    bytes_accessed = (xT.size * itemsize + wsc_p.size * 4 + w_slab.size * itemsize
                      + b_slab.size * 4 + 4 * (C + O + 2) * b_pad)

    cT, outT, l1, div = pl.pallas_call(
        kernel,
        grid=(g,),
        in_specs=[
            pl.BlockSpec((dp, tb), lambda i: (0, i)),        # x_T: batch-blocked
            pl.BlockSpec((C, dp), lambda i: (0, 0)),         # Wsc: VMEM-resident
            pl.BlockSpec(w_slab.shape, lambda i: (0, 0)),    # MLP weights: resident
            pl.BlockSpec(b_slab.shape, lambda i: (0, 0)),    # biases: resident
        ],
        out_specs=(
            pl.BlockSpec((C, tb), lambda i: (0, i)),
            pl.BlockSpec((O, tb), lambda i: (0, i)),
            pl.BlockSpec((1, tb), lambda i: (0, i)),
            pl.BlockSpec((1, tb), lambda i: (0, i)),
        ),
        out_shape=(
            jax.ShapeDtypeStruct((C, b_pad), jnp.float32),
            jax.ShapeDtypeStruct((O, b_pad), jnp.float32),
            jax.ShapeDtypeStruct((1, b_pad), jnp.float32),
            jax.ShapeDtypeStruct((1, b_pad), jnp.float32),
        ),
        compiler_params=pltpu.CompilerParams(
            dimension_semantics=("parallel",)),
        cost_estimate=pl.CostEstimate(
            flops=int(flops), transcendentals=int(C),
            bytes_accessed=int(bytes_accessed)),
    )(xT, wsc_p, w_slab, b_slab)

    c = cT[:, :B].T
    out = outT[:, :B].T
    return c, out, l1[0, 0], div[0, 0]


def init_params(key, dim, concept_size, output_size):
    """Deterministic synthetic parameter init (PyTorch Linear shapes)."""
    ks = jax.random.split(key, 8)

    def lin(kw, kb, out_f, in_f):
        bound = 1.0 / jnp.sqrt(in_f)
        w = jax.random.uniform(kw, (out_f, in_f), jnp.float32, -bound, bound)
        b = jax.random.uniform(kb, (1, out_f), jnp.float32, -bound, bound)
        return w, b

    wsc, bsc = lin(ks[0], ks[1], concept_size, dim)
    w1, b1 = lin(ks[2], ks[3], 64, concept_size)
    w2, b2 = lin(ks[4], ks[5], 64, 64)
    w3, b3 = lin(ks[6], ks[7], output_size, 64)
    return (wsc, bsc, w1, b1, w2, b2, w3, b3)


def reference_forward(x, params):
    """Pure-JAX f32 reference for validation."""
    wsc, bsc, w1, b1, w2, b2, w3, b3 = params
    c = x @ wsc.T + bsc
    h = jnp.maximum(c @ w1.T + b1, 0.0)
    h = jnp.maximum(h @ w2.T + b2, 0.0)
    out = h @ w3.T + b3
    l1 = jnp.sum(jnp.abs(wsc))
    wn = wsc / jnp.maximum(jnp.linalg.norm(wsc, axis=1, keepdims=True), 1e-12)
    cos = wn @ wn.T - jnp.eye(wsc.shape[0], dtype=jnp.float32)
    div = jnp.sum(cos ** 2)
    return c, out, l1, div


def _check(res, ref, tols):
    for got, want, tol in zip(res, ref, tols):
        assert jnp.allclose(got, want, atol=tol, rtol=tol), (got, want)


if __name__ == "__main__":
    key = jax.random.PRNGKey(0)
    kx, kx2, kp = jax.random.split(key, 3)

    # module-implied shapes: input dim is fixed to 15 by `dim = 15`
    batch, dim, concept_size, output_size = 8, 15, 8, 4
    x = jax.random.normal(kx, (batch, dim), jnp.float32)
    params = init_params(kp, dim, concept_size, output_size)
    ref = reference_forward(x, params)

    # 1) f32 MXU path: tight check against the f32 reference
    fwd_f32 = jax.jit(functools.partial(cbm_forward, compute_dtype=jnp.float32))
    res = fwd_f32(x, params)
    jax.block_until_ready(res)
    _check(res, ref, (1e-4, 1e-4, 1e-4, 1e-4))

    # 2) default bf16 MXU path (f32 accumulate / f32 elementwise): bf16-level tol
    fwd_bf16 = jax.jit(cbm_forward)
    res16 = fwd_bf16(x, params)
    jax.block_until_ready(res16)
    _check(res16, ref, (5e-2, 5e-2, 1e-3, 1e-3))

    # 3) multi-tile batch grid (g > 1): exercises pipelining, padding, pl.when gate
    xb = jax.random.normal(kx2, (640, dim), jnp.float32)
    refb = reference_forward(xb, params)
    fwd_big = jax.jit(functools.partial(cbm_forward, compute_dtype=jnp.float32,
                                        batch_block=256))
    resb = fwd_big(xb, params)
    jax.block_until_ready(resb)
    _check(resb, refb, (1e-4, 1e-4, 1e-4, 1e-4))

    print("KERNEL_OK")
</pallas_src>

<mosaic_0001>
module attributes {stable_mosaic.version = 11 : i64} {
  func.func @cbm_kernel(%arg0: i32, %arg1: memref<16x128xf32, #tpu.memory_space<vmem>>, %arg2: memref<8x16xf32, #tpu.memory_space<vmem>>, %arg3: memref<136x128xf32, #tpu.memory_space<vmem>>, %arg4: memref<64x8xf32, #tpu.memory_space<vmem>>, %arg5: memref<8x128xf32, #tpu.memory_space<vmem>>, %arg6: memref<4x128xf32, #tpu.memory_space<vmem>>, %arg7: memref<1x128xf32, #tpu.memory_space<vmem>>, %arg8: memref<1x128xf32, #tpu.memory_space<vmem>>) attributes {dimension_semantics = [#tpu.dimension_semantics<parallel>], iteration_bounds = array<i64: 1>, scalar_prefetch = 0 : i64, scratch_operands = 0 : i64, tpu.core_type = #tpu.core_type<tc>, window_params = [{transform_indices = @transform_0, window_bounds = array<i64: 16, 128>}, {pipeline_mode = #tpu.pipeline_mode<synchronous>, transform_indices = @transform_1, window_bounds = array<i64: 8, 16>}, {pipeline_mode = #tpu.pipeline_mode<synchronous>, transform_indices = @transform_2, window_bounds = array<i64: 136, 128>}, {pipeline_mode = #tpu.pipeline_mode<synchronous>, transform_indices = @transform_3, window_bounds = array<i64: 64, 8>}, {transform_indices = @transform_4, window_bounds = array<i64: 8, 128>}, {transform_indices = @transform_5, window_bounds = array<i64: 4, 128>}, {transform_indices = @transform_6, window_bounds = array<i64: 1, 128>}, {transform_indices = @transform_7, window_bounds = array<i64: 1, 128>}]} {
    %c0 = arith.constant 0 : index
    %c0_0 = arith.constant 0 : index
    %0 = vector.load %arg2[%c0, %c0_0] : memref<8x16xf32, #tpu.memory_space<vmem>>, vector<8x16xf32>
    %c0_1 = arith.constant 0 : index
    %c0_2 = arith.constant 0 : index
    %1 = vector.load %arg1[%c0_1, %c0_2] : memref<16x128xf32, #tpu.memory_space<vmem>>, vector<16x128xf32>
    %c0_3 = arith.constant 0 : index
    %c0_4 = arith.constant 0 : index
    %2 = vector.load %arg3[%c0_3, %c0_4] : memref<136x128xf32, #tpu.memory_space<vmem>>, vector<64x8xf32>
    %c64 = arith.constant 64 : index
    %c0_5 = arith.constant 0 : index
    %3 = vector.load %arg3[%c64, %c0_5] : memref<136x128xf32, #tpu.memory_space<vmem>>, vector<64x64xf32>
    %c128 = arith.constant 128 : index
    %c0_6 = arith.constant 0 : index
    %4 = vector.load %arg3[%c128, %c0_6] : memref<136x128xf32, #tpu.memory_space<vmem>>, vector<4x64xf32>
    %c0_7 = arith.constant 0 : index
    %c0_8 = arith.constant 0 : index
    %5 = vector.load %arg4[%c0_7, %c0_8] : memref<64x8xf32, #tpu.memory_space<vmem>>, vector<8x1xf32>
    %c0_9 = arith.constant 0 : index
    %c1 = arith.constant 1 : index
    %6 = vector.load %arg4[%c0_9, %c1] : memref<64x8xf32, #tpu.memory_space<vmem>>, vector<64x1xf32>
    %c0_10 = arith.constant 0 : index
    %c2 = arith.constant 2 : index
    %7 = vector.load %arg4[%c0_10, %c2] : memref<64x8xf32, #tpu.memory_space<vmem>>, vector<64x1xf32>
    %c0_11 = arith.constant 0 : index
    %c3 = arith.constant 3 : index
    %8 = vector.load %arg4[%c0_11, %c3] : memref<64x8xf32, #tpu.memory_space<vmem>>, vector<4x1xf32>
    %cst = arith.constant dense<0.000000e+00> : vector<8x128xf32>
    %9 = tpu.matmul %0, %1, %cst {dimension_numbers = #tpu.dot_dimension_numbers<[1], [0], [0], [1], [0, 0, 1, 1], [], []>} : vector<8x16xf32>, vector<16x128xf32>, vector<8x128xf32> -> vector<8x128xf32>
    %10 = vector.broadcast %5 : vector<8x1xf32> to vector<8x128xf32>
    %11 = arith.addf %9, %10 : vector<8x128xf32>
    %c0_12 = arith.constant 0 : index
    %c0_13 = arith.constant 0 : index
    %12 = vector.load %arg5[%c0_12, %c0_13] : memref<8x128xf32, #tpu.memory_space<vmem>>, vector<8x128xf32>
    tpu.vector_store %arg5[%c0_12, %c0_13], %11 {strides = array<i32>} : memref<8x128xf32, #tpu.memory_space<vmem>>, vector<8x128xf32>,
    %cst_14 = arith.constant dense<0.000000e+00> : vector<64x128xf32>
    %13 = tpu.matmul %2, %11, %cst_14 {dimension_numbers = #tpu.dot_dimension_numbers<[1], [0], [0], [1], [0, 0, 1, 1], [], []>} : vector<64x8xf32>, vector<8x128xf32>, vector<64x128xf32> -> vector<64x128xf32>
    %14 = vector.broadcast %6 : vector<64x1xf32> to vector<64x128xf32>
    %15 = arith.addf %13, %14 : vector<64x128xf32>
    %cst_15 = arith.constant 0.000000e+00 : f32
    %16 = vector.broadcast %cst_15 : f32 to vector<64x128xf32>
    %17 = arith.maximumf %15, %16 : vector<64x128xf32>
    %cst_16 = arith.constant dense<0.000000e+00> : vector<64x128xf32>
    %18 = tpu.matmul %3, %17, %cst_16 {dimension_numbers = #tpu.dot_dimension_numbers<[1], [0], [0], [1], [0, 0, 1, 1], [], []>} : vector<64x64xf32>, vector<64x128xf32>, vector<64x128xf32> -> vector<64x128xf32>
    %19 = vector.broadcast %7 : vector<64x1xf32> to vector<64x128xf32>
    %20 = arith.addf %18, %19 : vector<64x128xf32>
    %cst_17 = arith.constant 0.000000e+00 : f32
    %21 = vector.broadcast %cst_17 : f32 to vector<64x128xf32>
    %22 = arith.maximumf %20, %21 : vector<64x128xf32>
    %cst_18 = arith.constant dense<0.000000e+00> : vector<4x128xf32>
    %23 = tpu.matmul %4, %22, %cst_18 {dimension_numbers = #tpu.dot_dimension_numbers<[1], [0], [0], [1], [0, 0, 1, 1], [], []>} : vector<4x64xf32>, vector<64x128xf32>, vector<4x128xf32> -> vector<4x128xf32>
    %24 = vector.broadcast %8 : vector<4x1xf32> to vector<4x128xf32>
    %25 = arith.addf %23, %24 : vector<4x128xf32>
    %c0_19 = arith.constant 0 : index
    %c0_20 = arith.constant 0 : index
    %26 = vector.load %arg6[%c0_19, %c0_20] : memref<4x128xf32, #tpu.memory_space<vmem>>, vector<4x128xf32>
    tpu.vector_store %arg6[%c0_19, %c0_20], %25 {strides = array<i32>} : memref<4x128xf32, #tpu.memory_space<vmem>>, vector<4x128xf32>,
    %c0_i32 = arith.constant 0 : i32
    %27 = arith.cmpi eq, %arg0, %c0_i32 : i32
    %28 = arith.extui %27 : i1 to i32
    %c0_i32_21 = arith.constant 0 : i32
    %29 = arith.cmpi ne, %28, %c0_i32_21 : i32
    scf.if %29 {
      %33 = math.absf %0 : vector<8x16xf32>
      %34 = vector.shape_cast %33 : vector<8x16xf32> to vector<1x8x16xf32>
      %cst_24 = arith.constant dense<0.000000e+00> : vector<1xf32>
      %35 = vector.multi_reduction <add>, %34, %cst_24 [1, 2] : vector<1x8x16xf32> to vector<1xf32>
      %36 = vector.shape_cast %35 : vector<1xf32> to vector<1x1x1xf32>
      %37 = vector.extract %36[0, 0, 0] : f32 from vector<1x1x1xf32>
      %38 = arith.mulf %0, %0 : vector<8x16xf32>
      %cst_25 = arith.constant dense<0.000000e+00> : vector<8xf32>
      %39 = vector.multi_reduction <add>, %38, %cst_25 [1] : vector<8x16xf32> to vector<8xf32>
      %40 = vector.shape_cast %39 : vector<8xf32> to vector<8x1xf32>
      %cst_26 = arith.constant 1.000000e-24 : f32
      %41 = vector.broadcast %cst_26 : f32 to vector<8x1xf32>
      %42 = arith.maximumf %40, %41 : vector<8x1xf32>
      %43 = math.rsqrt %42 : vector<8x1xf32>
      %44 = vector.broadcast %43 : vector<8x1xf32> to vector<8x16xf32>
      %45 = arith.mulf %0, %44 : vector<8x16xf32>
      %cst_27 = arith.constant dense<0.000000e+00> : vector<8x8xf32>
      %46 = tpu.matmul %45, %45, %cst_27 {dimension_numbers = #tpu.dot_dimension_numbers<[1], [1], [0], [0], [0, 0, 1, 0], [], []>} : vector<8x16xf32>, vector<8x16xf32>, vector<8x8xf32> -> vector<8x8xf32>
      %47 = tpu.iota {dimensions = array<i32: 0>} : vector<8x8xi32>
      %48 = tpu.iota {dimensions = array<i32: 1>} : vector<8x8xi32>
      %49 = arith.cmpi eq, %47, %48 : vector<8x8xi32>
      %cst_28 = arith.constant 1.000000e+00 : f32
      %cst_29 = arith.constant 0.000000e+00 : f32
      %50 = vector.broadcast %cst_28 : f32 to vector<8x8xf32>
      %51 = vector.broadcast %cst_29 : f32 to vector<8x8xf32>
      %52 = arith.select %49, %50, %51 : vector<8x8xi1>, vector<8x8xf32>
      %53 = arith.subf %46, %52 : vector<8x8xf32>
      %cst_30 = arith.constant 1.000000e+00 : f32
      %54 = vector.broadcast %cst_30 : f32 to vector<1x128xf32>
      %55 = vector.broadcast %37 : f32 to vector<1x128xf32>
      %56 = arith.mulf %54, %55 : vector<1x128xf32>
      %c0_31 = arith.constant 0 : index
      %c0_32 = arith.constant 0 : index
      %57 = vector.load %arg7[%c0_31, %c0_32] : memref<1x128xf32, #tpu.memory_space<vmem>>, vector<1x128xf32>
      tpu.vector_store %arg7[%c0_31, %c0_32], %56 {strides = array<i32>} : memref<1x128xf32, #tpu.memory_space<vmem>>, vector<1x128xf32>,
      %58 = arith.mulf %53, %53 : vector<8x8xf32>
      %59 = vector.shape_cast %58 : vector<8x8xf32> to vector<1x8x8xf32>
      %cst_33 = arith.constant dense<0.000000e+00> : vector<1xf32>
      %60 = vector.multi_reduction <add>, %59, %cst_33 [1, 2] : vector<1x8x8xf32> to vector<1xf32>
      %61 = vector.shape_cast %60 : vector<1xf32> to vector<1x1x1xf32>
      %62 = vector.extract %61[0, 0, 0] : f32 from vector<1x1x1xf32>
      %63 = vector.broadcast %62 : f32 to vector<1x128xf32>
      %64 = arith.mulf %54, %63 : vector<1x128xf32>
      %c0_34 = arith.constant 0 : index
      %c0_35 = arith.constant 0 : index
      %65 = vector.load %arg8[%c0_34, %c0_35] : memref<1x128xf32, #tpu.memory_space<vmem>>, vector<1x128xf32>
      tpu.vector_store %arg8[%c0_34, %c0_35], %64 {strides = array<i32>} : memref<1x128xf32, #tpu.memory_space<vmem>>, vector<1x128xf32>,
    } else {
    }
    %c0_i32_22 = arith.constant 0 : i32
    %30 = arith.cmpi ne, %arg0, %c0_i32_22 : i32
    %31 = arith.extui %30 : i1 to i32
    %c0_i32_23 = arith.constant 0 : i32
    %32 = arith.cmpi ne, %31, %c0_i32_23 : i32
    scf.if %32 {
      %cst_24 = arith.constant 0.000000e+00 : f32
      %33 = vector.broadcast %cst_24 : f32 to vector<1x128xf32>
      %c0_25 = arith.constant 0 : index
      %c0_26 = arith.constant 0 : index
      %34 = vector.load %arg7[%c0_25, %c0_26] : memref<1x128xf32, #tpu.memory_space<vmem>>, vector<1x128xf32>
      tpu.vector_store %arg7[%c0_25, %c0_26], %33 {strides = array<i32>} : memref<1x128xf32, #tpu.memory_space<vmem>>, vector<1x128xf32>,
      %cst_27 = arith.constant 0.000000e+00 : f32
      %35 = vector.broadcast %cst_27 : f32 to vector<1x128xf32>
      %c0_28 = arith.constant 0 : index
      %c0_29 = arith.constant 0 : index
      %36 = vector.load %arg8[%c0_28, %c0_29] : memref<1x128xf32, #tpu.memory_space<vmem>>, vector<1x128xf32>
      tpu.vector_store %arg8[%c0_28, %c0_29], %35 {strides = array<i32>} : memref<1x128xf32, #tpu.memory_space<vmem>>, vector<1x128xf32>,
    } else {
    }
    return
  }
  func.func @transform_0(%arg0: i32) -> (i32, i32) {
    %c0_i32 = arith.constant 0 : i32
    %c0_i32_0 = arith.constant 0 : i32
    return %c0_i32, %arg0 : i32, i32
  }
  func.func @transform_1(%arg0: i32) -> (i32, i32) {
    %c0_i32 = arith.constant 0 : i32
    %c0_i32_0 = arith.constant 0 : i32
    %c0_i32_1 = arith.constant 0 : i32
    return %c0_i32, %c0_i32_0 : i32, i32
  }
  func.func @transform_2(%arg0: i32) -> (i32, i32) {
    %c0_i32 = arith.constant 0 : i32
    %c0_i32_0 = arith.constant 0 : i32
    %c0_i32_1 = arith.constant 0 : i32
    return %c0_i32, %c0_i32_0 : i32, i32
  }
  func.func @transform_3(%arg0: i32) -> (i32, i32) {
    %c0_i32 = arith.constant 0 : i32
    %c0_i32_0 = arith.constant 0 : i32
    %c0_i32_1 = arith.constant 0 : i32
    return %c0_i32, %c0_i32_0 : i32, i32
  }
  func.func @transform_4(%arg0: i32) -> (i32, i32) {
    %c0_i32 = arith.constant 0 : i32
    %c0_i32_0 = arith.constant 0 : i32
    return %c0_i32, %arg0 : i32, i32
  }
  func.func @transform_5(%arg0: i32) -> (i32, i32) {
    %c0_i32 = arith.constant 0 : i32
    %c0_i32_0 = arith.constant 0 : i32
    return %c0_i32, %arg0 : i32, i32
  }
  func.func @transform_6(%arg0: i32) -> (i32, i32) {
    %c0_i32 = arith.constant 0 : i32
    %c0_i32_0 = arith.constant 0 : i32
    return %c0_i32, %arg0 : i32, i32
  }
  func.func @transform_7(%arg0: i32) -> (i32, i32) {
    %c0_i32 = arith.constant 0 : i32
    %c0_i32_0 = arith.constant 0 : i32
    return %c0_i32, %arg0 : i32, i32
  }
}

</mosaic_0001>

<llo_original>
// kernel: cbm_forward.1
$region0: #{cbm_forward.1}
  #allocation0 [shape = 'u32[]', space=smem, size = 0x4, offset = 0x4, fixed_abs, tag = 'smem constant byte address 0x4 - core index']
  #allocation1 [shape = 'u32[144,128]{1,0:T(1,128)}', space=vmem, size = 0x12000, scoped, tag = 'internal scratch']
  %s0 = inlined_call_operand.vmem [shape: f32[16,128], index: 0, kind: input, shape index: {}]
  %s1 = inlined_call_operand.vmem [shape: f32[8,16], index: 1, kind: input, shape index: {}]
  %s2 = inlined_call_operand.vmem [shape: f32[136,128], index: 2, kind: input, shape index: {}]
  %s3 = inlined_call_operand.vmem [shape: f32[64,8], index: 3, kind: input, shape index: {}]
  %s4 = inlined_call_operand.vmem [shape: f32[8,128], index: 4, kind: output, shape index: {0}]
  %s5 = inlined_call_operand.vmem [shape: f32[4,128], index: 5, kind: output, shape index: {1}]
  %s6 = inlined_call_operand.hbm [shape: f32[1,128], index: 6, kind: output, shape index: {2}]
  %s7 = inlined_call_operand.hbm [shape: f32[1,128], index: 7, kind: output, shape index: {3}]
  %8 = xla_tuple %s4, %s5, %s6, %s7
  %s9 = sld [smem:[#allocation0]]
  $region58: #{cbm_forward.1} parent=0
    _
  %s11 = ssub.s32 1, %s9
  %s12 = scalar_select 0, %s11, %s9
  $region1: #{cbm_forward.1} parent=0
    #allocation2 [shape = 'u8[512]{0}', space=vmem, size = 0x400, scoped, tag = 'output window, operand 2, single buffered']
    #allocation3 [shape = 's32[1]{0}', space=sflag, size = 0x4, scoped, tag = 'scoped memory for cbm_forward.1']
    #allocation4 [shape = 'u8[512]{0}', space=vmem, size = 0x400, scoped, tag = 'output window, operand 3, single buffered']
    #allocation5 [shape = 's32[1]{0}', space=sflag, size = 0x4, scoped, tag = 'scoped memory for cbm_forward.1']
    %13 = vsyncpa [#allocation3], 0
    %14 = vsyncpa [#allocation5], 0
    // Predicated region
    $region2: #{cbm_forward.1} parent=1 // pred_check
      _
    $region3: #{cbm_forward.1} parent=1 // pred_check_branch
      %16 = sbr.rel (0) target = $region5
    $region4: #{cbm_forward.1} parent=1 // pred_region
      _
    $region5: #{cbm_forward.1} parent=1 // pred_fallthru
      _
    // Predicated region
    $region6: #{cbm_forward.1} parent=1 // pred_check
      _
    $region7: #{cbm_forward.1} parent=1 // pred_check_branch
      %18 = sbr.rel (0) target = $region9
    $region8: #{cbm_forward.1} parent=1 // pred_region
      _
    $region9: #{cbm_forward.1} parent=1 // pred_fallthru
      _
    // Predicated region
    $region10: #{cbm_forward.1} parent=1 // pred_check
      _
    $region11: #{cbm_forward.1} parent=1 // pred_check_branch
      %20 = sbr.rel (0) target = $region13
    $region12: #{cbm_forward.1} parent=1 // pred_region
      _
    $region13: #{cbm_forward.1} parent=1 // pred_fallthru
      _
    // Predicated region
    $region14: #{cbm_forward.1} parent=1 // pred_check
      _
    $region15: #{cbm_forward.1} parent=1 // pred_check_branch
      %22 = sbr.rel (0) target = $region17
    $region16: #{cbm_forward.1} parent=1 // pred_region
      _
    $region17: #{cbm_forward.1} parent=1 // pred_fallthru
      _
    %v23 = vld [vmem:[%s1] sm:$0xff]
    %v24 = vld [vmem:[%s0] sm:$0xff]
    %v25 = vld [vmem:[%s0 + $0x8] sm:$0xff]
    %v26 = vld [vmem:[%s2] sm:$0xff]
    %v27 = vld [vmem:[%s2 + $0x8] sm:$0xff]
    %v28 = vld [vmem:[%s2 + $0x10] sm:$0xff]
    %v29 = vld [vmem:[%s2 + $0x18] sm:$0xff]
    %v30 = vld [vmem:[%s2 + $0x20] sm:$0xff]
    %v31 = vld [vmem:[%s2 + $0x28] sm:$0xff]
    %v32 = vld [vmem:[%s2 + $0x30] sm:$0xff]
    %v33 = vld [vmem:[%s2 + $0x38] sm:$0xff]
    %v34 = vld [vmem:[%s2 + $0x40] sm:$0xff]
    %v35 = vld [vmem:[%s2 + $0x48] sm:$0xff]
    %v36 = vld [vmem:[%s2 + $0x50] sm:$0xff]
    %v37 = vld [vmem:[%s2 + $0x58] sm:$0xff]
    %v38 = vld [vmem:[%s2 + $0x60] sm:$0xff]
    %v39 = vld [vmem:[%s2 + $0x68] sm:$0xff]
    %v40 = vld [vmem:[%s2 + $0x70] sm:$0xff]
    %v41 = vld [vmem:[%s2 + $0x78] sm:$0xff]
    %v42 = vld [vmem:[%s2 + $0x80] sm:$0xf]
    %v43 = vld [vmem:[%s3] sm:$0xff]
    %v44 = vld [vmem:[%s3 + $0x8] sm:$0xff]
    %v45 = vld [vmem:[%s3 + $0x10] sm:$0xff]
    %v46 = vld [vmem:[%s3 + $0x18] sm:$0xff]
    %v47 = vld [vmem:[%s3 + $0x20] sm:$0xff]
    %v48 = vld [vmem:[%s3 + $0x28] sm:$0xff]
    %v49 = vld [vmem:[%s3 + $0x30] sm:$0xff]
    %v50 = vld [vmem:[%s3 + $0x38] sm:$0xff]
    %v51 = vld [vmem:[%s3] sm:$0xf]
    %53 = vset.pattern.permute.xlu0 0
    %54 = vperm.xlu0 %53, %v43
    %v55 = vpop.permute.xlu0 %54
    %vm57 = vcmask 130048
    %v59 = vsel %vm57, %v23, 0
    %61 = vmatprep.subr.mxu0 0.0
    %62 = vmatpush1.msra.mxu0 0.0
    %63 = vmatprep.subr.mxu0 0.0
    %64 = vmatpush1.msra.mxu0 0.0
    %65 = vmatprep.subr.mxu0 0.0
    %66 = vmatpush1.msra.mxu0 0.0
    %67 = vmatprep.subr.mxu0 0.0
    %68 = vmatpush1.msra.mxu0 0.0
    %69 = vmatprep.subr.mxu0 0.0
    %70 = vmatpush1.msra.mxu0 0.0
    %71 = vmatprep.subr.mxu0 0.0
    %72 = vmatpush1.msra.mxu0 0.0
    %73 = vmatprep.subr.mxu0 0.0
    %74 = vmatpush1.msra.mxu0 0.0
    %75 = vmatprep.subr.mxu0 0.0
    %76 = vmatpush1.msra.mxu0 0.0
    %77 = vmatprep.subr.mxu0 0.0
    %78 = vmatpush1.msra.mxu0 0.0
    %79 = vmatprep.subr.mxu0 0.0
    %80 = vmatpush1.msra.mxu0 0.0
    %81 = vmatprep.subr.mxu0 0.0
    %82 = vmatpush1.msra.mxu0 0.0
    %83 = vmatprep.subr.mxu0 0.0
    %84 = vmatpush1.msra.mxu0 0.0
    %85 = vmatprep.subr.mxu0 0.0
    %86 = vmatpush1.msra.mxu0 0.0
    %87 = vmatprep.subr.mxu0 0.0
    %88 = vmatpush1.msra.mxu0 0.0
    %89 = vmatprep.subr.mxu0 0.0
    %90 = vmatpush1.msra.mxu0 %v25
    %91 = vmatprep.subr.mxu0 0.0
    %92 = vmatpush1.msra.mxu0 %v24
    %93 = vmatprep.subr.mxu0 0.0
    %94 = vmatpush2.msra.mxu0 0.0
    %95 = vmatprep.subr.mxu0 0.0
    %96 = vmatpush2.msra.mxu0 0.0
    %97 = vmatprep.subr.mxu0 0.0
    %98 = vmatpush2.msra.mxu0 0.0
    %99 = vmatprep.subr.mxu0 0.0
    %100 = vmatpush2.msra.mxu0 0.0
    %101 = vmatprep.subr.mxu0 0.0
    %102 = vmatpush2.msra.mxu0 0.0
    %103 = vmatprep.subr.mxu0 0.0
    %104 = vmatpush2.msra.mxu0 0.0
    %105 = vmatprep.subr.mxu0 0.0
    %106 = vmatpush2.msra.mxu0 0.0
    %107 = vmatprep.subr.mxu0 0.0
    %108 = vmatpush2.msra.mxu0 0.0
    %109 = vmatprep.subr.mxu0 0.0
    %110 = vmatpush2.msra.mxu0 0.0
    %111 = vmatprep.subr.mxu0 0.0
    %112 = vmatpush2.msra.mxu0 0.0
    %113 = vmatprep.subr.mxu0 0.0
    %114 = vmatpush2.msra.mxu0 0.0
    %115 = vmatprep.subr.mxu0 0.0
    %116 = vmatpush2.msra.mxu0 0.0
    %117 = vmatprep.subr.mxu0 0.0
    %118 = vmatpush2.msra.mxu0 0.0
    %119 = vmatprep.subr.mxu0 0.0
    %120 = vmatpush2.msra.mxu0 0.0
    %121 = vmatprep.subr.mxu0 0.0
    %122 = vmatpush2.msra.mxu0 0.0
    %123 = vmatprep.subr.mxu0 0.0
    %124 = vmatpush2.msra.mxu0 0.0
    %125 = vmatprep.mubr.f32.mxu0 0.0
    %126 = vmatmul.mubr.f32.gmra.mxu0 %v59
    %v127 = vpop.f32.mrf.mxu0
    %v128 = vadd.f32 %v55, %v127
    %v129 = vpop.f32.mrf.mxu0
    %130 = vdwg.mxu0
    %131 = vst [vmem:[%s4] sm:$0xff] %v128
    %132 = vset.pattern.permute.xlu0 1
    %133 = vperm.xlu0 %132, %v43
    %v134 = vpop.permute.xlu0 %133
    %137 = vset.pattern.permute.xlu0 1
    %138 = vperm.xlu0 %137, %v44
    %v139 = vpop.permute.xlu0 %138
    %142 = vset.pattern.permute.xlu0 1
    %143 = vperm.xlu0 %142, %v45
    %v144 = vpop.permute.xlu0 %143
    %147 = vset.pattern.permute.xlu0 1
    %148 = vperm.xlu0 %147, %v46
    %v149 = vpop.permute.xlu0 %148
    %152 = vset.pattern.permute.xlu0 1
    %153 = vperm.xlu0 %152, %v47
    %v154 = vpop.permute.xlu0 %153
    %157 = vset.pattern.permute.xlu0 1
    %158 = vperm.xlu0 %157, %v48
    %v159 = vpop.permute.xlu0 %158
    %162 = vset.pattern.permute.xlu0 1
    %163 = vperm.xlu0 %162, %v49
    %v164 = vpop.permute.xlu0 %163
    %167 = vset.pattern.permute.xlu0 1
    %168 = vperm.xlu0 %167, %v50
    %v169 = vpop.permute.xlu0 %168
    %vm171 = vcmask 64512
    %v173 = vsel %vm171, %v26, 0
    %v176 = vsel %vm171, %v27, 0
    %v179 = vsel %vm171, %v28, 0
    %v182 = vsel %vm171, %v29, 0
    %v185 = vsel %vm171, %v30, 0
    %v188 = vsel %vm171, %v31, 0
    %v191 = vsel %vm171, %v32, 0
    %v194 = vsel %vm171, %v33, 0
    %196 = vmatprep.subr.mxu0 0.0
    %197 = vmatpush1.msra.mxu0 0.0
    %198 = vmatprep.subr.mxu0 0.0
    %199 = vmatpush1.msra.mxu0 0.0
    %200 = vmatprep.subr.mxu0 0.0
    %201 = vmatpush1.msra.mxu0 0.0
    %202 = vmatprep.subr.mxu0 0.0
    %203 = vmatpush1.msra.mxu0 0.0
    %204 = vmatprep.subr.mxu0 0.0
    %205 = vmatpush1.msra.mxu0 0.0
    %206 = vmatprep.subr.mxu0 0.0
    %207 = vmatpush1.msra.mxu0 0.0
    %208 = vmatprep.subr.mxu0 0.0
    %209 = vmatpush1.msra.mxu0 0.0
    %210 = vmatprep.subr.mxu0 0.0
    %211 = vmatpush1.msra.mxu0 0.0
    %212 = vmatprep.subr.mxu0 0.0
    %213 = vmatpush1.msra.mxu0 0.0
    %214 = vmatprep.subr.mxu0 0.0
    %215 = vmatpush1.msra.mxu0 0.0
    %216 = vmatprep.subr.mxu0 0.0
    %217 = vmatpush1.msra.mxu0 0.0
    %218 = vmatprep.subr.mxu0 0.0
    %219 = vmatpush1.msra.mxu0 0.0
    %220 = vmatprep.subr.mxu0 0.0
    %221 = vmatpush1.msra.mxu0 0.0
    %222 = vmatprep.subr.mxu0 0.0
    %223 = vmatpush1.msra.mxu0 0.0
    %224 = vmatprep.subr.mxu0 0.0
    %225 = vmatpush1.msra.mxu0 0.0
    %226 = vmatprep.subr.mxu0 0.0
    %227 = vmatpush1.msra.mxu0 %v128
    %228 = vmatprep.subr.mxu0 0.0
    %229 = vmatpush2.msra.mxu0 0.0
    %230 = vmatprep.subr.mxu0 0.0
    %231 = vmatpush2.msra.mxu0 0.0
    %232 = vmatprep.subr.mxu0 0.0
    %233 = vmatpush2.msra.mxu0 0.0
    %234 = vmatprep.subr.mxu0 0.0
    %235 = vmatpush2.msra.mxu0 0.0
    %236 = vmatprep.subr.mxu0 0.0
    %237 = vmatpush2.msra.mxu0 0.0
    %238 = vmatprep.subr.mxu0 0.0
    %239 = vmatpush2.msra.mxu0 0.0
    %240 = vmatprep.subr.mxu0 0.0
    %241 = vmatpush2.msra.mxu0 0.0
    %242 = vmatprep.subr.mxu0 0.0
    %243 = vmatpush2.msra.mxu0 0.0
    %244 = vmatprep.subr.mxu0 0.0
    %245 = vmatpush2.msra.mxu0 0.0
    %246 = vmatprep.subr.mxu0 0.0
    %247 = vmatpush2.msra.mxu0 0.0
    %248 = vmatprep.subr.mxu0 0.0
    %249 = vmatpush2.msra.mxu0 0.0
    %250 = vmatprep.subr.mxu0 0.0
    %251 = vmatpush2.msra.mxu0 0.0
    %252 = vmatprep.subr.mxu0 0.0
    %253 = vmatpush2.msra.mxu0 0.0
    %254 = vmatprep.subr.mxu0 0.0
    %255 = vmatpush2.msra.mxu0 0.0
    %256 = vmatprep.subr.mxu0 0.0
    %257 = vmatpush2.msra.mxu0 0.0
    %258 = vmatprep.subr.mxu0 0.0
    %259 = vmatpush2.msra.mxu0 0.0
    %260 = vmatprep.mubr.f32.mxu0 0.0
    %261 = vmatmul.mubr.f32.gmra.mxu0 %v173
    %v262 = vpop.f32.mrf.mxu0
    %v263 = vadd.f32 %v134, %v262
    %v264 = vpop.f32.mrf.mxu0
    %265 = vmatprep.mubr.f32.mxu0 0.0
    %266 = vmatmul.mubr.f32.gmra.mxu0 %v176
    %v267 = vpop.f32.mrf.mxu0
    %v268 = vadd.f32 %v139, %v267
    %v269 = vpop.f32.mrf.mxu0
    %270 = vmatprep.mubr.f32.mxu0 0.0
    %271 = vmatmul.mubr.f32.gmra.mxu0 %v179
    %v272 = vpop.f32.mrf.mxu0
    %v273 = vadd.f32 %v144, %v272
    %v274 = vpop.f32.mrf.mxu0
    %275 = vmatprep.mubr.f32.mxu0 0.0
    %276 = vmatmul.mubr.f32.gmra.mxu0 %v182
    %v277 = vpop.f32.mrf.mxu0
    %v278 = vadd.f32 %v149, %v277
    %v279 = vpop.f32.mrf.mxu0
    %280 = vmatprep.mubr.f32.mxu0 0.0
    %281 = vmatmul.mubr.f32.gmra.mxu0 %v185
    %v282 = vpop.f32.mrf.mxu0
    %v283 = vadd.f32 %v154, %v282
    %v284 = vpop.f32.mrf.mxu0
    %285 = vmatprep.mubr.f32.mxu0 0.0
    %286 = vmatmul.mubr.f32.gmra.mxu0 %v188
    %v287 = vpop.f32.mrf.mxu0
    %v288 = vadd.f32 %v159, %v287
    %v289 = vpop.f32.mrf.mxu0
    %290 = vmatprep.mubr.f32.mxu0 0.0
    %291 = vmatmul.mubr.f32.gmra.mxu0 %v191
    %v292 = vpop.f32.mrf.mxu0
    %v293 = vadd.f32 %v164, %v292
    %v294 = vpop.f32.mrf.mxu0
    %295 = vmatprep.mubr.f32.mxu0 0.0
    %296 = vmatmul.mubr.f32.gmra.mxu0 %v194
    %v297 = vpop.f32.mrf.mxu0
    %v298 = vadd.f32 %v169, %v297
    %v299 = vpop.f32.mrf.mxu0
    %300 = vdwg.mxu0
    %v301 = vmax.f32 %v263, 0.0
    %v302 = vmax.f32 %v268, 0.0
    %v303 = vmax.f32 %v273, 0.0
    %v304 = vmax.f32 %v278, 0.0
    %v305 = vmax.f32 %v283, 0.0
    %v306 = vmax.f32 %v288, 0.0
    %v307 = vmax.f32 %v293, 0.0
    %v308 = vmax.f32 %v298, 0.0
    %309 = vset.pattern.permute.xlu0 2
    %310 = vperm.xlu0 %309, %v43
    %v311 = vpop.permute.xlu0 %310
    %313 = vset.pattern.permute.xlu0 2
    %314 = vperm.xlu0 %313, %v44
    %v315 = vpop.permute.xlu0 %314
    %317 = vset.pattern.permute.xlu0 2
    %318 = vperm.xlu0 %317, %v45
    %v319 = vpop.permute.xlu0 %318
    %321 = vset.pattern.permute.xlu0 2
    %322 = vperm.xlu0 %321, %v46
    %v323 = vpop.permute.xlu0 %322
    %325 = vset.pattern.permute.xlu0 2
    %326 = vperm.xlu0 %325, %v47
    %v327 = vpop.permute.xlu0 %326
    %329 = vset.pattern.permute.xlu0 2
    %330 = vperm.xlu0 %329, %v48
    %v331 = vpop.permute.xlu0 %330
    %333 = vset.pattern.permute.xlu0 2
    %334 = vperm.xlu0 %333, %v49
    %v335 = vpop.permute.xlu0 %334
    %337 = vset.pattern.permute.xlu0 2
    %338 = vperm.xlu0 %337, %v50
    %v339 = vpop.permute.xlu0 %338
    %vm341 = vcmask 523264
    %v343 = vsel %vm341, %v34, 0
    %v346 = vsel %vm341, %v35, 0
    %v349 = vsel %vm341, %v36, 0
    %v352 = vsel %vm341, %v37, 0
    %v355 = vsel %vm341, %v38, 0
    %v358 = vsel %vm341, %v39, 0
    %v361 = vsel %vm341, %v40, 0
    %v364 = vsel %vm341, %v41, 0
    %366 = vmatprep.subr.mxu0 0.0
    %367 = vmatpush1.msra.mxu0 0.0
    %368 = vmatprep.subr.mxu0 0.0
    %369 = vmatpush1.msra.mxu0 0.0
    %370 = vmatprep.subr.mxu0 0.0
    %371 = vmatpush1.msra.mxu0 0.0
    %372 = vmatprep.subr.mxu0 0.0
    %373 = vmatpush1.msra.mxu0 0.0
    %374 = vmatprep.subr.mxu0 0.0
    %375 = vmatpush1.msra.mxu0 0.0
    %376 = vmatprep.subr.mxu0 0.0
    %377 = vmatpush1.msra.mxu0 0.0
    %378 = vmatprep.subr.mxu0 0.0
    %379 = vmatpush1.msra.mxu0 0.0
    %380 = vmatprep.subr.mxu0 0.0
    %381 = vmatpush1.msra.mxu0 0.0
    %382 = vmatprep.subr.mxu0 0.0
    %383 = vmatpush1.msra.mxu0 %v308
    %384 = vmatprep.subr.mxu0 0.0
    %385 = vmatpush1.msra.mxu0 %v307
    %386 = vmatprep.subr.mxu0 0.0
    %387 = vmatpush1.msra.mxu0 %v306
    %388 = vmatprep.subr.mxu0 0.0
    %389 = vmatpush1.msra.mxu0 %v305
    %390 = vmatprep.subr.mxu0 0.0
    %391 = vmatpush1.msra.mxu0 %v304
    %392 = vmatprep.subr.mxu0 0.0
    %393 = vmatpush1.msra.mxu0 %v303
    %394 = vmatprep.subr.mxu0 0.0
    %395 = vmatpush1.msra.mxu0 %v302
    %396 = vmatprep.subr.mxu0 0.0
    %397 = vmatpush1.msra.mxu0 %v301
    %398 = vmatprep.subr.mxu0 0.0
    %399 = vmatpush2.msra.mxu0 0.0
    %400 = vmatprep.subr.mxu0 0.0
    %401 = vmatpush2.msra.mxu0 0.0
    %402 = vmatprep.subr.mxu0 0.0
    %403 = vmatpush2.msra.mxu0 0.0
    %404 = vmatprep.subr.mxu0 0.0
    %405 = vmatpush2.msra.mxu0 0.0
    %406 = vmatprep.subr.mxu0 0.0
    %407 = vmatpush2.msra.mxu0 0.0
    %408 = vmatprep.subr.mxu0 0.0
    %409 = vmatpush2.msra.mxu0 0.0
    %410 = vmatprep.subr.mxu0 0.0
    %411 = vmatpush2.msra.mxu0 0.0
    %412 = vmatprep.subr.mxu0 0.0
    %413 = vmatpush2.msra.mxu0 0.0
    %414 = vmatprep.subr.mxu0 0.0
    %415 = vmatpush2.msra.mxu0 0.0
    %416 = vmatprep.subr.mxu0 0.0
    %417 = vmatpush2.msra.mxu0 0.0
    %418 = vmatprep.subr.mxu0 0.0
    %419 = vmatpush2.msra.mxu0 0.0
    %420 = vmatprep.subr.mxu0 0.0
    %421 = vmatpush2.msra.mxu0 0.0
    %422 = vmatprep.subr.mxu0 0.0
    %423 = vmatpush2.msra.mxu0 0.0
    %424 = vmatprep.subr.mxu0 0.0
    %425 = vmatpush2.msra.mxu0 0.0
    %426 = vmatprep.subr.mxu0 0.0
    %427 = vmatpush2.msra.mxu0 0.0
    %428 = vmatprep.subr.mxu0 0.0
    %429 = vmatpush2.msra.mxu0 0.0
    %430 = vmatprep.mubr.f32.mxu0 0.0
    %431 = vmatmul.mubr.f32.gmra.mxu0 %v343
    %v432 = vpop.f32.mrf.mxu0
    %v433 = vadd.f32 %v311, %v432
    %v434 = vpop.f32.mrf.mxu0
    %435 = vmatprep.mubr.f32.mxu0 0.0
    %436 = vmatmul.mubr.f32.gmra.mxu0 %v346
    %v437 = vpop.f32.mrf.mxu0
    %v438 = vadd.f32 %v315, %v437
    %v439 = vpop.f32.mrf.mxu0
    %440 = vmatprep.mubr.f32.mxu0 0.0
    %441 = vmatmul.mubr.f32.gmra.mxu0 %v349
    %v442 = vpop.f32.mrf.mxu0
    %v443 = vadd.f32 %v319, %v442
    %v444 = vpop.f32.mrf.mxu0
    %445 = vmatprep.mubr.f32.mxu0 0.0
    %446 = vmatmul.mubr.f32.gmra.mxu0 %v352
    %v447 = vpop.f32.mrf.mxu0
    %v448 = vadd.f32 %v323, %v447
    %v449 = vpop.f32.mrf.mxu0
    %450 = vmatprep.mubr.f32.mxu0 0.0
    %451 = vmatmul.mubr.f32.gmra.mxu0 %v355
    %v452 = vpop.f32.mrf.mxu0
    %v453 = vadd.f32 %v327, %v452
    %v454 = vpop.f32.mrf.mxu0
    %455 = vmatprep.mubr.f32.mxu0 0.0
    %456 = vmatmul.mubr.f32.gmra.mxu0 %v358
    %v457 = vpop.f32.mrf.mxu0
    %v458 = vadd.f32 %v331, %v457
    %v459 = vpop.f32.mrf.mxu0
    %460 = vmatprep.mubr.f32.mxu0 0.0
    %461 = vmatmul.mubr.f32.gmra.mxu0 %v361
    %v462 = vpop.f32.mrf.mxu0
    %v463 = vadd.f32 %v335, %v462
    %v464 = vpop.f32.mrf.mxu0
    %465 = vmatprep.mubr.f32.mxu0 0.0
    %466 = vmatmul.mubr.f32.gmra.mxu0 %v364
    %v467 = vpop.f32.mrf.mxu0
    %v468 = vadd.f32 %v339, %v467
    %v469 = vpop.f32.mrf.mxu0
    %470 = vdwg.mxu0
    %v471 = vmax.f32 %v433, 0.0
    %v472 = vmax.f32 %v438, 0.0
    %v473 = vmax.f32 %v443, 0.0
    %v474 = vmax.f32 %v448, 0.0
    %v475 = vmax.f32 %v453, 0.0
    %v476 = vmax.f32 %v458, 0.0
    %v477 = vmax.f32 %v463, 0.0
    %v478 = vmax.f32 %v468, 0.0
    %480 = vset.pattern.permute.xlu0 3
    %481 = vperm.xlu0 %480, %v51
    %v482 = vpop.permute.xlu0 %481
    %v485 = vsel %vm341, %v42, 0
    %487 = vmatprep.subr.mxu0 0.0
    %488 = vmatpush1.msra.mxu0 0.0
    %489 = vmatprep.subr.mxu0 0.0
    %490 = vmatpush1.msra.mxu0 0.0
    %491 = vmatprep.subr.mxu0 0.0
    %492 = vmatpush1.msra.mxu0 0.0
    %493 = vmatprep.subr.mxu0 0.0
    %494 = vmatpush1.msra.mxu0 0.0
    %495 = vmatprep.subr.mxu0 0.0
    %496 = vmatpush1.msra.mxu0 0.0
    %497 = vmatprep.subr.mxu0 0.0
    %498 = vmatpush1.msra.mxu0 0.0
    %499 = vmatprep.subr.mxu0 0.0
    %500 = vmatpush1.msra.mxu0 0.0
    %501 = vmatprep.subr.mxu0 0.0
    %502 = vmatpush1.msra.mxu0 0.0
    %503 = vmatprep.subr.mxu0 0.0
    %504 = vmatpush1.msra.mxu0 %v478
    %505 = vmatprep.subr.mxu0 0.0
    %506 = vmatpush1.msra.mxu0 %v477
    %507 = vmatprep.subr.mxu0 0.0
    %508 = vmatpush1.msra.mxu0 %v476
    %509 = vmatprep.subr.mxu0 0.0
    %510 = vmatpush1.msra.mxu0 %v475
    %511 = vmatprep.subr.mxu0 0.0
    %512 = vmatpush1.msra.mxu0 %v474
    %513 = vmatprep.subr.mxu0 0.0
    %514 = vmatpush1.msra.mxu0 %v473
    %515 = vmatprep.subr.mxu0 0.0
    %516 = vmatpush1.msra.mxu0 %v472
    %517 = vmatprep.subr.mxu0 0.0
    %518 = vmatpush1.msra.mxu0 %v471
    %519 = vmatprep.subr.mxu0 0.0
    %520 = vmatpush2.msra.mxu0 0.0
    %521 = vmatprep.subr.mxu0 0.0
    %522 = vmatpush2.msra.mxu0 0.0
    %523 = vmatprep.subr.mxu0 0.0
    %524 = vmatpush2.msra.mxu0 0.0
    %525 = vmatprep.subr.mxu0 0.0
    %526 = vmatpush2.msra.mxu0 0.0
    %527 = vmatprep.subr.mxu0 0.0
    %528 = vmatpush2.msra.mxu0 0.0
    %529 = vmatprep.subr.mxu0 0.0
    %530 = vmatpush2.msra.mxu0 0.0
    %531 = vmatprep.subr.mxu0 0.0
    %532 = vmatpush2.msra.mxu0 0.0
    %533 = vmatprep.subr.mxu0 0.0
    %534 = vmatpush2.msra.mxu0 0.0
    %535 = vmatprep.subr.mxu0 0.0
    %536 = vmatpush2.msra.mxu0 0.0
    %537 = vmatprep.subr.mxu0 0.0
    %538 = vmatpush2.msra.mxu0 0.0
    %539 = vmatprep.subr.mxu0 0.0
    %540 = vmatpush2.msra.mxu0 0.0
    %541 = vmatprep.subr.mxu0 0.0
    %542 = vmatpush2.msra.mxu0 0.0
    %543 = vmatprep.subr.mxu0 0.0
    %544 = vmatpush2.msra.mxu0 0.0
    %545 = vmatprep.subr.mxu0 0.0
    %546 = vmatpush2.msra.mxu0 0.0
    %547 = vmatprep.subr.mxu0 0.0
    %548 = vmatpush2.msra.mxu0 0.0
    %549 = vmatprep.subr.mxu0 0.0
    %550 = vmatpush2.msra.mxu0 0.0
    %551 = vmatprep.mubr.f32.mxu0 0.0
    %552 = vmatmul.mubr.f32.gmra.mxu0 %v485
    %v553 = vpop.f32.mrf.mxu0
    %v554 = vadd.f32 %v482, %v553
    %v555 = vpop.f32.mrf.mxu0
    %556 = vdwg.mxu0
    %557 = vst [vmem:[%s5] sm:$0xf] %v554
    %p558 = scmp.eq.s32.totalorder 0, 0
    // Predicated region
    $region18: #{cbm_forward.1} parent=1 // pred_check
      %p559 = pneg %p558
    $region19: #{cbm_forward.1} parent=1 // pred_check_branch
      %561 = sbr.rel (%p559) target = $region21
    $region20: #{cbm_forward.1} parent=1 // pred_region
      %v562 = vand.u32 2147483647, %v23
      %v563 = vsel %vm57, %v562, 0.0
      %564 = vadd.xlane.f32.xlu0 %v563
      %v565 = vpop.xlane.xlu0 %564
      %v566 = vrot.slane %v565, 4
      %v567 = vadd.f32 %v565, %v566
      %v568 = vrot.slane %v567, 2
      %v569 = vadd.f32 %v567, %v568
      %v570 = vrot.slane %v569, 1
      %v571 = vadd.f32 %v569, %v570
      %s572 = vtos %v571
      %v573 = vmul.f32 %v23, %v23
      %v574 = vsel %vm57, %v573, 0.0
      %575 = vadd.xlane.f32.xlu0 %v574
      %v576 = vpop.xlane.xlu0 %575
      %v577 = vmax.f32 %v576, 1e-24
      %v578 = vrsqrt.pop %v577
      %v579 = vmul.f32 %v23, %v578
      %v581 = vsel %vm57, %v579, 0
      %583 = vmatprep.subr.mxu0 0.0
      %584 = vmatpush1.xpose.msra.mxu0 0.0
      %585 = vmatprep.subr.mxu0 0.0
      %586 = vmatpush1.xpose.msra.mxu0 0.0
      %587 = vmatprep.subr.mxu0 0.0
      %588 = vmatpush1.xpose.msra.mxu0 0.0
      %589 = vmatprep.subr.mxu0 0.0
      %590 = vmatpush1.xpose.msra.mxu0 0.0
      %591 = vmatprep.subr.mxu0 0.0
      %592 = vmatpush1.xpose.msra.mxu0 0.0
      %593 = vmatprep.subr.mxu0 0.0
      %594 = vmatpush1.xpose.msra.mxu0 0.0
      %595 = vmatprep.subr.mxu0 0.0
      %596 = vmatpush1.xpose.msra.mxu0 0.0
      %597 = vmatprep.subr.mxu0 0.0
      %598 = vmatpush1.xpose.msra.mxu0 0.0
      %599 = vmatprep.subr.mxu0 0.0
      %600 = vmatpush1.xpose.msra.mxu0 0.0
      %601 = vmatprep.subr.mxu0 0.0
      %602 = vmatpush1.xpose.msra.mxu0 0.0
      %603 = vmatprep.subr.mxu0 0.0
      %604 = vmatpush1.xpose.msra.mxu0 0.0
      %605 = vmatprep.subr.mxu0 0.0
      %606 = vmatpush1.xpose.msra.mxu0 0.0
      %607 = vmatprep.subr.mxu0 0.0
      %608 = vmatpush1.xpose.msra.mxu0 0.0
      %609 = vmatprep.subr.mxu0 0.0
      %610 = vmatpush1.xpose.msra.mxu0 0.0
      %611 = vmatprep.subr.mxu0 0.0
      %612 = vmatpush1.xpose.msra.mxu0 0.0
      %613 = vmatprep.subr.mxu0 0.0
      %614 = vmatpush1.xpose.msra.mxu0 %v581
      %615 = vmatprep.subr.mxu0 0.0
      %616 = vmatpush2.xpose.msra.mxu0 0.0
      %617 = vmatprep.subr.mxu0 0.0
      %618 = vmatpush2.xpose.msra.mxu0 0.0
      %619 = vmatprep.subr.mxu0 0.0
      %620 = vmatpush2.xpose.msra.mxu0 0.0
      %621 = vmatprep.subr.mxu0 0.0
      %622 = vmatpush2.xpose.msra.mxu0 0.0
      %623 = vmatprep.subr.mxu0 0.0
      %624 = vmatpush2.xpose.msra.mxu0 0.0
      %625 = vmatprep.subr.mxu0 0.0
      %626 = vmatpush2.xpose.msra.mxu0 0.0
      %627 = vmatprep.subr.mxu0 0.0
      %628 = vmatpush2.xpose.msra.mxu0 0.0
      %629 = vmatprep.subr.mxu0 0.0
      %630 = vmatpush2.xpose.msra.mxu0 0.0
      %631 = vmatprep.subr.mxu0 0.0
      %632 = vmatpush2.xpose.msra.mxu0 0.0
      %633 = vmatprep.subr.mxu0 0.0
      %634 = vmatpush2.xpose.msra.mxu0 0.0
      %635 = vmatprep.subr.mxu0 0.0
      %636 = vmatpush2.xpose.msra.mxu0 0.0
      %637 = vmatprep.subr.mxu0 0.0
      %638 = vmatpush2.xpose.msra.mxu0 0.0
      %639 = vmatprep.subr.mxu0 0.0
      %640 = vmatpush2.xpose.msra.mxu0 0.0
      %641 = vmatprep.subr.mxu0 0.0
      %642 = vmatpush2.xpose.msra.mxu0 0.0
      %643 = vmatprep.subr.mxu0 0.0
      %644 = vmatpush2.xpose.msra.mxu0 0.0
      %645 = vmatprep.subr.mxu0 0.0
      %646 = vmatpush2.xpose.msra.mxu0 0.0
      %647 = vmatprep.mubr.f32.mxu0 0.0
      %648 = vmatmul.mubr.f32.gmra.mxu0 %v581
      %v649 = vpop.f32.mrf.mxu0
      %v650 = vadd.f32 0.0, %v649
      %v651 = vpop.f32.mrf.mxu0
      %652 = vdwg.mxu0
      %v653 = vlaneseq
      %v654 = vshrl.u32 %v653, 7
      %v655 = vlaneseq
      %v656 = vand.u32 %v655, 127
      %vm657 = vcmp.eq.s32.totalorder %v654, %v656
      %v658 = vsel %vm657, 1.0, 0.0
      %v659 = vsub.f32 %v650, %v658
      %v660 = vstv %s572
      %661 = vst [vmem:[#allocation2] sm:$0x1] %v660
      %v662 = vmul.f32 %v659, %v659
      %v663 = vsel %vm171, %v662, 0.0
      %664 = vadd.xlane.f32.xlu0 %v663
      %v665 = vpop.xlane.xlu0 %664
      %v666 = vrot.slane %v665, 4
      %v667 = vadd.f32 %v665, %v666
      %v668 = vrot.slane %v667, 2
      %v669 = vadd.f32 %v667, %v668
      %v670 = vrot.slane %v669, 1
      %v671 = vadd.f32 %v669, %v670
      %s672 = vtos %v671
      %v673 = vstv %s672
      %674 = vst [vmem:[#allocation4] sm:$0x1] %v673
    $region21: #{cbm_forward.1} parent=1 // pred_fallthru
      _
    %p675 = scmp.ne.s32.totalorder 0, 0
    // Predicated region
    $region22: #{cbm_forward.1} parent=1 // pred_check
      %p676 = pneg %p675
    $region23: #{cbm_forward.1} parent=1 // pred_check_branch
      %678 = sbr.rel (%p676) target = $region25
    $region24: #{cbm_forward.1} parent=1 // pred_region
      %679 = vst [vmem:[#allocation2] sm:$0x1] 0.0
      %680 = vst [vmem:[#allocation4] sm:$0x1] 0.0
    $region25: #{cbm_forward.1} parent=1 // pred_fallthru
      _
    // Predicated region
    $region26: #{cbm_forward.1} parent=1 // pred_check
      _
    $region27: #{cbm_forward.1} parent=1 // pred_check_branch
      %682 = sbr.rel (0) target = $region29
    $region28: #{cbm_forward.1} parent=1 // pred_region
      _
    $region29: #{cbm_forward.1} parent=1 // pred_fallthru
      _
    // Predicated region
    $region30: #{cbm_forward.1} parent=1 // pred_check
      _
    $region31: #{cbm_forward.1} parent=1 // pred_check_branch
      %684 = sbr.rel (0) target = $region33
    $region32: #{cbm_forward.1} parent=1 // pred_region
      _
    $region33: #{cbm_forward.1} parent=1 // pred_fallthru
      _
    // Predicated region
    $region34: #{cbm_forward.1} parent=1 // pred_check
      _
    $region35: #{cbm_forward.1} parent=1 // pred_check_branch
      %686 = sbr.rel (0) target = $region37
    $region36: #{cbm_forward.1} parent=1 // pred_region
      %s688 = ssub.s32 16, 16
      %689 = vsyncadd [#allocation3], %s688
      %s691 = sshll.u32 [#allocation2], 4
      %s692 = int_to_ptr.vmem [resolvable:$true] %s691
      %694 = dma.vmem_to_hbm [thread:$0]  %s692, 16, %s6, [#allocation3]
    $region37: #{cbm_forward.1} parent=1 // pred_fallthru
      _
    // Predicated region
    $region38: #{cbm_forward.1} parent=1 // pred_check
      _
    $region39: #{cbm_forward.1} parent=1 // pred_check_branch
      %696 = sbr.rel (0) target = $region41
    $region40: #{cbm_forward.1} parent=1 // pred_region
      %s698 = ssub.s32 16, 16
      %699 = vsyncadd [#allocation5], %s698
      %s701 = sshll.u32 [#allocation4], 4
      %s702 = int_to_ptr.vmem [resolvable:$true] %s701
      %704 = dma.vmem_to_hbm [thread:$0]  %s702, 16, %s7, [#allocation5]
    $region41: #{cbm_forward.1} parent=1 // pred_fallthru
      _
    // Predicated region
    $region42: #{cbm_forward.1} parent=1 // pred_check
      _
    $region43: #{cbm_forward.1} parent=1 // pred_check_branch
      %706 = sbr.rel (0) target = $region45
    $region44: #{cbm_forward.1} parent=1 // pred_region
      _
    $region45: #{cbm_forward.1} parent=1 // pred_fallthru
      _
    // Predicated region
    $region46: #{cbm_forward.1} parent=1 // pred_check
      _
    $region47: #{cbm_forward.1} parent=1 // pred_check_branch
      %708 = sbr.rel (0) target = $region49
    $region48: #{cbm_forward.1} parent=1 // pred_region
      _
    $region49: #{cbm_forward.1} parent=1 // pred_fallthru
      _
    // Predicated region
    $region50: #{cbm_forward.1} parent=1 // pred_check
      _
    $region51: #{cbm_forward.1} parent=1 // pred_check_branch
      %710 = sbr.rel (0) target = $region53
    $region52: #{cbm_forward.1} parent=1 // pred_region
      %711 = dma.done [#allocation3], 16
    $region53: #{cbm_forward.1} parent=1 // pred_fallthru
      _
    // Predicated region
    $region54: #{cbm_forward.1} parent=1 // pred_check
      _
    $region55: #{cbm_forward.1} parent=1 // pred_check_branch
      %713 = sbr.rel (0) target = $region57
    $region56: #{cbm_forward.1} parent=1 // pred_region
      %714 = dma.done [#allocation5], 16
    $region57: #{cbm_forward.1} parent=1 // pred_fallthru
      _
    %715 = vsyncpa [#allocation3], 1
    %716 = vsyncpa [#allocation5], 1

</llo_original>
